<compile_context>
chip_gen: v7x
topology: tpu7x:2x2x1
jax: 0.10.0
libtpu: 0.0.40
codegen_flags: <defaults>
</compile_context>

<pallas_src>
import math

import jax
import jax.numpy as jnp
from jax.experimental import pallas as pl
from jax.experimental.pallas import tpu as pltpu

INPUT_SIZE = 2
HIDDEN_SIZE = 64
OUTPUT_SIZE = 4

# Lane-padded kernel-side sizes (compute only; never written back to HBM).
HID_PAD = 128   # hidden 64 -> 128: full lane width for the MXU K dimension
OUT_PAD = 128   # w2/b2 padded to a lane-dense [128,128] MXU tile; only
                # cols 0:OUTPUT_SIZE are real and only those are stored.


def _round_up(n, m):
    return ((n + m - 1) // m) * m


def dqn_kernel(x_ref, w1_ref, b1_ref, w2_ref, b2_ref, out_ref):
    # x_ref:  [TB, 2]
    # w1_ref: [2, HID_PAD]        b1_ref: [1, HID_PAD]
    # w2_ref: [HID_PAD, OUT_PAD]  b2_ref: [1, OUT_PAD]
    # out_ref:[TB, OUTPUT_SIZE]   (lane-sparse VMEM block, contiguous HBM rows)
    x = x_ref[...]
    # fc1: K=2 contraction on the VPU (two FMAs), bias as the accumulator init.
    # All elementwise math stays f32 (v5e-safe).
    h = (b1_ref[...]
         + x[:, 0:1] * w1_ref[0:1, :]
         + x[:, 1:2] * w1_ref[1:2, :])
    h = jnp.maximum(h, 0.0)
    # fc2: lane-dense [TB,128] @ [128,128] on the MXU, f32 accumulate.
    out = jnp.dot(h, w2_ref[...], preferred_element_type=jnp.float32) + b2_ref[...]
    # Store only the 4 real output lanes; padded lanes never leave VMEM.
    out_ref[...] = out[:, :OUTPUT_SIZE].astype(out_ref.dtype)


def dqn_forward(x, w1p, b1p, w2p, b2p, *, tb=1024, out_dtype=jnp.float32):
    """x: [B, INPUT_SIZE] f32.  Padded params from pad_params().

    Returns [B, OUTPUT_SIZE] in `out_dtype` (f32 by default; bf16 halves the
    residual output HBM traffic, accumulation stays f32 in-kernel).
    """
    B, F = x.shape
    assert F == INPUT_SIZE

    # --- batch tiling: pad B only to a multiple of 8, derive the tile from the
    # --- block count (no 512-row rounding overshoot).
    Bp = _round_up(B, 8)
    num_blocks = pl.cdiv(Bp, tb)
    if num_blocks == 1 and Bp >= 256:
        # v7x: need >= 2 "parallel" blocks so both TensorCores get work.
        num_blocks = 2
    TB = _round_up(pl.cdiv(Bp, num_blocks), 8)
    Bp = TB * num_blocks                      # dead rows <= 8*num_blocks - 1

    # Single fused pad (no zeros+scatter materialization); skip entirely if exact.
    xp = x if Bp == B else jnp.pad(x, ((0, Bp - B), (0, 0)))

    if num_blocks == 1:
        # Small batches: one straight-line invocation, whole problem in VMEM,
        # no per-step pipeline prologue/epilogue.
        out = pl.pallas_call(
            dqn_kernel,
            out_shape=jax.ShapeDtypeStruct((Bp, OUTPUT_SIZE), out_dtype),
        )(xp, w1p, b1p, w2p, b2p)
    else:
        # Larger batches: tile over batch ("parallel" -> 2-TC sharding on v7x,
        # pipelined x/out DMA elsewhere); weights/biases stay VMEM-resident
        # (constant block index).
        # NOTE: pipeline_mode=pl.Buffered(3) on the x/out specs is a further
        # option if profiling ever shows exposed DMA waits at large TB.
        out = pl.pallas_call(
            dqn_kernel,
            out_shape=jax.ShapeDtypeStruct((Bp, OUTPUT_SIZE), out_dtype),
            grid=(num_blocks,),
            in_specs=[
                pl.BlockSpec((TB, INPUT_SIZE), lambda i: (i, 0)),
                pl.BlockSpec((INPUT_SIZE, HID_PAD), lambda i: (0, 0)),
                pl.BlockSpec((1, HID_PAD), lambda i: (0, 0)),
                pl.BlockSpec((HID_PAD, OUT_PAD), lambda i: (0, 0)),
                pl.BlockSpec((1, OUT_PAD), lambda i: (0, 0)),
            ],
            out_specs=pl.BlockSpec((TB, OUTPUT_SIZE), lambda i: (i, 0)),
            compiler_params=pltpu.CompilerParams(
                dimension_semantics=("parallel",)
            ),
        )(xp, w1p, b1p, w2p, b2p)

    return out if Bp == B else out[:B]


def init_params(key):
    """Deterministic init mirroring nn.Linear default (uniform +/- 1/sqrt(fan_in)).

    Weights are returned transposed to [in, out] (unpadded, for the reference).
    """
    k1, k2, k3, k4 = jax.random.split(key, 4)
    bound1 = 1.0 / math.sqrt(INPUT_SIZE)
    bound2 = 1.0 / math.sqrt(HIDDEN_SIZE)
    w1 = jax.random.uniform(k1, (INPUT_SIZE, HIDDEN_SIZE), jnp.float32, -bound1, bound1)
    b1 = jax.random.uniform(k2, (HIDDEN_SIZE,), jnp.float32, -bound1, bound1)
    w2 = jax.random.uniform(k3, (HIDDEN_SIZE, OUTPUT_SIZE), jnp.float32, -bound2, bound2)
    b2 = jax.random.uniform(k4, (OUTPUT_SIZE,), jnp.float32, -bound2, bound2)
    return w1, b1, w2, b2


def pad_params(w1, b1, w2, b2):
    """Zero-pad params into the lane-dense kernel layout (done once, offline)."""
    w1p = jnp.zeros((INPUT_SIZE, HID_PAD), jnp.float32).at[:, :HIDDEN_SIZE].set(w1)
    b1p = jnp.zeros((1, HID_PAD), jnp.float32).at[0, :HIDDEN_SIZE].set(b1)
    w2p = jnp.zeros((HID_PAD, OUT_PAD), jnp.float32).at[:HIDDEN_SIZE, :OUTPUT_SIZE].set(w2)
    b2p = jnp.zeros((1, OUT_PAD), jnp.float32).at[0, :OUTPUT_SIZE].set(b2)
    return w1p, b1p, w2p, b2p


def dqn_forward_ref(x, w1, b1, w2, b2):
    h = jnp.maximum(x @ w1 + b1, 0.0)
    return h @ w2 + b2


if __name__ == "__main__":
    key = jax.random.PRNGKey(0)
    kx, kp = jax.random.split(key)
    w1, b1, w2, b2 = init_params(kp)
    w1p, b1p, w2p, b2p = pad_params(w1, b1, w2, b2)

    # Small batch: exercises the straight-line (no-grid) path, no padding at all.
    batch = 8
    x = jax.random.normal(kx, (batch, INPUT_SIZE), jnp.float32)
    out = jax.block_until_ready(dqn_forward(x, w1p, b1p, w2p, b2p))
    ref = dqn_forward_ref(x, w1, b1, w2, b2)
    assert out.shape == (batch, OUTPUT_SIZE)
    assert jnp.allclose(out, ref, atol=1e-5, rtol=1e-5), "small-batch mismatch vs reference"

    # Larger batch: exercises the 2-block "parallel" grid path (<=8 pad rows).
    batch2 = 600
    x2 = jax.random.normal(kx, (batch2, INPUT_SIZE), jnp.float32)
    out2 = jax.block_until_ready(dqn_forward(x2, w1p, b1p, w2p, b2p))
    ref2 = dqn_forward_ref(x2, w1, b1, w2, b2)
    assert out2.shape == (batch2, OUTPUT_SIZE)
    assert jnp.allclose(out2, ref2, atol=1e-5, rtol=1e-5), "tiled-batch mismatch vs reference"

    # bf16-output variant (f32 accumulate, bf16 store): looser tolerance.
    out3 = jax.block_until_ready(
        dqn_forward(x2, w1p, b1p, w2p, b2p, out_dtype=jnp.bfloat16))
    assert out3.dtype == jnp.bfloat16 and out3.shape == (batch2, OUTPUT_SIZE)
    assert jnp.allclose(out3.astype(jnp.float32), ref2, atol=1e-2, rtol=1e-2), \
        "bf16-output mismatch vs reference"

    print("KERNEL_OK")
</pallas_src>

<mosaic_0001>
module attributes {stable_mosaic.version = 11 : i64} {
  func.func @dqn_kernel(%arg0: memref<8x2xf32, #tpu.memory_space<vmem>>, %arg1: memref<2x128xf32, #tpu.memory_space<vmem>>, %arg2: memref<1x128xf32, #tpu.memory_space<vmem>>, %arg3: memref<128x128xf32, #tpu.memory_space<vmem>>, %arg4: memref<1x128xf32, #tpu.memory_space<vmem>>, %arg5: memref<8x4xf32, #tpu.memory_space<vmem>>) attributes {dimension_semantics = [], scalar_prefetch = 0 : i64, scratch_operands = 0 : i64, tpu.core_type = #tpu.core_type<tc>} {
    %c0 = arith.constant 0 : index
    %c0_0 = arith.constant 0 : index
    %0 = vector.load %arg0[%c0, %c0_0] : memref<8x2xf32, #tpu.memory_space<vmem>>, vector<8x2xf32>
    %c0_1 = arith.constant 0 : index
    %c0_2 = arith.constant 0 : index
    %1 = vector.load %arg2[%c0_1, %c0_2] : memref<1x128xf32, #tpu.memory_space<vmem>>, vector<1x128xf32>
    %2 = vector.extract_strided_slice %0 {offsets = [0, 0], sizes = [8, 1], strides = [1, 1]} : vector<8x2xf32> to vector<8x1xf32>
    %c0_3 = arith.constant 0 : index
    %c0_4 = arith.constant 0 : index
    %3 = vector.load %arg1[%c0_3, %c0_4] : memref<2x128xf32, #tpu.memory_space<vmem>>, vector<1x128xf32>
    %4 = vector.broadcast %2 : vector<8x1xf32> to vector<8x128xf32>
    %5 = vector.broadcast %3 : vector<1x128xf32> to vector<8x128xf32>
    %6 = arith.mulf %4, %5 : vector<8x128xf32>
    %7 = vector.broadcast %1 : vector<1x128xf32> to vector<8x128xf32>
    %8 = arith.addf %7, %6 : vector<8x128xf32>
    %9 = vector.extract_strided_slice %0 {offsets = [0, 1], sizes = [8, 1], strides = [1, 1]} : vector<8x2xf32> to vector<8x1xf32>
    %c1 = arith.constant 1 : index
    %c0_5 = arith.constant 0 : index
    %10 = vector.load %arg1[%c1, %c0_5] : memref<2x128xf32, #tpu.memory_space<vmem>>, vector<1x128xf32>
    %11 = vector.broadcast %9 : vector<8x1xf32> to vector<8x128xf32>
    %12 = vector.broadcast %10 : vector<1x128xf32> to vector<8x128xf32>
    %13 = arith.mulf %11, %12 : vector<8x128xf32>
    %14 = arith.addf %8, %13 : vector<8x128xf32>
    %cst = arith.constant 0.000000e+00 : f32
    %15 = vector.broadcast %cst : f32 to vector<8x128xf32>
    %16 = arith.maximumf %14, %15 : vector<8x128xf32>
    %c0_6 = arith.constant 0 : index
    %c0_7 = arith.constant 0 : index
    %17 = vector.load %arg3[%c0_6, %c0_7] : memref<128x128xf32, #tpu.memory_space<vmem>>, vector<128x128xf32>
    %cst_8 = arith.constant dense<0.000000e+00> : vector<8x128xf32>
    %18 = tpu.matmul %16, %17, %cst_8 {dimension_numbers = #tpu.dot_dimension_numbers<[1], [0], [0], [1], [0, 0, 1, 1], [], []>} : vector<8x128xf32>, vector<128x128xf32>, vector<8x128xf32> -> vector<8x128xf32>
    %c0_9 = arith.constant 0 : index
    %c0_10 = arith.constant 0 : index
    %19 = vector.load %arg4[%c0_9, %c0_10] : memref<1x128xf32, #tpu.memory_space<vmem>>, vector<1x128xf32>
    %20 = vector.broadcast %19 : vector<1x128xf32> to vector<8x128xf32>
    %21 = arith.addf %18, %20 : vector<8x128xf32>
    %22 = vector.extract_strided_slice %21 {offsets = [0, 0], sizes = [8, 4], strides = [1, 1]} : vector<8x128xf32> to vector<8x4xf32>
    %c0_11 = arith.constant 0 : index
    %c0_12 = arith.constant 0 : index
    %23 = vector.load %arg5[%c0_11, %c0_12] : memref<8x4xf32, #tpu.memory_space<vmem>>, vector<8x4xf32>
    tpu.vector_store %arg5[%c0_11, %c0_12], %22 {strides = array<i32>} : memref<8x4xf32, #tpu.memory_space<vmem>>, vector<8x4xf32>,
    return
  }
}

</mosaic_0001>

<llo_original>
// kernel: tpu_custom_call.1
$region0: #{tpu_custom_call.1}
  #allocation0 [shape = 'u32[]', space=smem, size = 0x4, offset = 0x4, fixed_abs, tag = 'smem constant byte address 0x4 - core index']
  #allocation1 [shape = 'u32[144,128]{1,0:T(1,128)}', space=vmem, size = 0x12000, scoped, tag = 'internal scratch']
  %s0 = inlined_call_operand.vmem [shape: f32[8,2], index: 0, kind: input, shape index: {}]
  %s1 = inlined_call_operand.vmem [shape: f32[2,128], index: 1, kind: input, shape index: {}]
  %s2 = inlined_call_operand.vmem [shape: f32[1,128], index: 2, kind: input, shape index: {}]
  %s3 = inlined_call_operand.hbm [shape: f32[128,128], index: 3, kind: input, shape index: {}]
  %s4 = inlined_call_operand.vmem [shape: f32[1,128], index: 4, kind: input, shape index: {}]
  %s5 = inlined_call_operand.vmem [shape: f32[8,4], index: 5, kind: output, shape index: {}]
  %s6 = sld [smem:[#allocation0]]
  $region34: #{tpu_custom_call.1} parent=0
    _
  %s8 = ssub.s32 1, %s6
  %s9 = scalar_select 0, %s8, %s6
  $region1: #{tpu_custom_call.1} parent=0
    #allocation2 [shape = 'u8[65536]{0}', space=vmem, size = 0x10000, scoped, tag = 'input window, operand 3, single buffered']
    #allocation3 [shape = 's32[1]{0}', space=sflag, size = 0x4, scoped, tag = 'scoped memory for tpu_custom_call.1']
    %10 = vsyncpa [#allocation3], 0
    // Predicated region
    $region2: #{tpu_custom_call.1} parent=1 // pred_check
      _
    $region3: #{tpu_custom_call.1} parent=1 // pred_check_branch
      %12 = sbr.rel (0) target = $region5
    $region4: #{tpu_custom_call.1} parent=1 // pred_region
      _
    $region5: #{tpu_custom_call.1} parent=1 // pred_fallthru
      _
    // Predicated region
    $region6: #{tpu_custom_call.1} parent=1 // pred_check
      _
    $region7: #{tpu_custom_call.1} parent=1 // pred_check_branch
      %14 = sbr.rel (0) target = $region9
    $region8: #{tpu_custom_call.1} parent=1 // pred_region
      _
    $region9: #{tpu_custom_call.1} parent=1 // pred_fallthru
      _
    // Predicated region
    $region10: #{tpu_custom_call.1} parent=1 // pred_check
      _
    $region11: #{tpu_custom_call.1} parent=1 // pred_check_branch
      %16 = sbr.rel (0) target = $region13
    $region12: #{tpu_custom_call.1} parent=1 // pred_region
      _
    $region13: #{tpu_custom_call.1} parent=1 // pred_fallthru
      _
    // Predicated region
    $region14: #{tpu_custom_call.1} parent=1 // pred_check
      _
    $region15: #{tpu_custom_call.1} parent=1 // pred_check_branch
      %18 = sbr.rel (0) target = $region17
    $region16: #{tpu_custom_call.1} parent=1 // pred_region
      %s20 = ssub.s32 2048, 2048
      %21 = vsyncadd [#allocation3], %s20
      %s22 = sshll.u32 [#allocation2], 4
      %s23 = int_to_ptr.vmem [resolvable:$true] %s22
      %28 = dma.hbm_to_vmem [thread:$0]  %s3, 2048, %s23, [#allocation3], 128, 128, 8
    $region17: #{tpu_custom_call.1} parent=1 // pred_fallthru
      _
    // Predicated region
    $region18: #{tpu_custom_call.1} parent=1 // pred_check
      _
    $region19: #{tpu_custom_call.1} parent=1 // pred_check_branch
      %30 = sbr.rel (0) target = $region21
    $region20: #{tpu_custom_call.1} parent=1 // pred_region
      _
    $region21: #{tpu_custom_call.1} parent=1 // pred_fallthru
      _
    // Predicated region
    $region22: #{tpu_custom_call.1} parent=1 // pred_check
      _
    $region23: #{tpu_custom_call.1} parent=1 // pred_check_branch
      %32 = sbr.rel (0) target = $region25
    $region24: #{tpu_custom_call.1} parent=1 // pred_region
      %33 = dma.done [#allocation3], 2048
    $region25: #{tpu_custom_call.1} parent=1 // pred_fallthru
      _
    %v34 = vld [vmem:[%s0] sm:$0xff]
    %v35 = vld [vmem:[%s2] sm:$0x1]
    %v36 = vld [vmem:[%s1] sm:$0x1]
    %38 = vset.pattern.permute.xlu0 0
    %39 = vperm.xlu0 %38, %v34
    %v40 = vpop.permute.xlu0 %39
    %v42 = vlaneseq
    %v43 = vshrl.u32 %v42, 7
    %v44 = vsub.s32 0, %v43
    %v45 = vrot.slane %v36, %v44
    %v46 = vmul.f32 %v40, %v45
    %v48 = vlaneseq
    %v49 = vshrl.u32 %v48, 7
    %v50 = vsub.s32 0, %v49
    %v51 = vrot.slane %v35, %v50
    %v53 = vadd.f32 %v51, %v46
    %v54 = vld [vmem:[%s1 + $0x1] sm:$0x1]
    %55 = vset.pattern.permute.xlu0 1
    %56 = vperm.xlu0 %55, %v34
    %v57 = vpop.permute.xlu0 %56
    %v59 = vlaneseq
    %v60 = vshrl.u32 %v59, 7
    %v61 = vsub.s32 0, %v60
    %v62 = vrot.slane %v54, %v61
    %v63 = vmul.f32 %v57, %v62
    %v64 = vadd.f32 %v53, %v63
    %v65 = vmax.f32 %v64, 0.0
    %v66 = vld [vmem:[#allocation2] sm:$0xff]
    %v67 = vld [vmem:[#allocation2 + $0x8] sm:$0xff]
    %v68 = vld [vmem:[#allocation2 + $0x10] sm:$0xff]
    %v69 = vld [vmem:[#allocation2 + $0x18] sm:$0xff]
    %v70 = vld [vmem:[#allocation2 + $0x20] sm:$0xff]
    %v71 = vld [vmem:[#allocation2 + $0x28] sm:$0xff]
    %v72 = vld [vmem:[#allocation2 + $0x30] sm:$0xff]
    %v73 = vld [vmem:[#allocation2 + $0x38] sm:$0xff]
    %v74 = vld [vmem:[#allocation2 + $0x40] sm:$0xff]
    %v75 = vld [vmem:[#allocation2 + $0x48] sm:$0xff]
    %v76 = vld [vmem:[#allocation2 + $0x50] sm:$0xff]
    %v77 = vld [vmem:[#allocation2 + $0x58] sm:$0xff]
    %v78 = vld [vmem:[#allocation2 + $0x60] sm:$0xff]
    %v79 = vld [vmem:[#allocation2 + $0x68] sm:$0xff]
    %v80 = vld [vmem:[#allocation2 + $0x70] sm:$0xff]
    %v81 = vld [vmem:[#allocation2 + $0x78] sm:$0xff]
    %v82 = vld [vmem:[%s4] sm:$0x1]
    %v84 = vlaneseq
    %v85 = vshrl.u32 %v84, 7
    %v86 = vsub.s32 0, %v85
    %v87 = vrot.slane %v82, %v86
    %89 = vmatprep.subr.mxu0 0.0
    %90 = vmatpush1.msra.mxu0 %v66
    %91 = vmatprep.subr.mxu0 0.0
    %92 = vmatpush1.msra.mxu0 %v67
    %93 = vmatprep.subr.mxu0 0.0
    %94 = vmatpush1.msra.mxu0 %v68
    %95 = vmatprep.subr.mxu0 0.0
    %96 = vmatpush1.msra.mxu0 %v69
    %97 = vmatprep.subr.mxu0 0.0
    %98 = vmatpush1.msra.mxu0 %v70
    %99 = vmatprep.subr.mxu0 0.0
    %100 = vmatpush1.msra.mxu0 %v71
    %101 = vmatprep.subr.mxu0 0.0
    %102 = vmatpush1.msra.mxu0 %v72
    %103 = vmatprep.subr.mxu0 0.0
    %104 = vmatpush1.msra.mxu0 %v73
    %105 = vmatprep.subr.mxu0 0.0
    %106 = vmatpush1.msra.mxu0 %v74
    %107 = vmatprep.subr.mxu0 0.0
    %108 = vmatpush1.msra.mxu0 %v75
    %109 = vmatprep.subr.mxu0 0.0
    %110 = vmatpush1.msra.mxu0 %v76
    %111 = vmatprep.subr.mxu0 0.0
    %112 = vmatpush1.msra.mxu0 %v77
    %113 = vmatprep.subr.mxu0 0.0
    %114 = vmatpush1.msra.mxu0 %v78
    %115 = vmatprep.subr.mxu0 0.0
    %116 = vmatpush1.msra.mxu0 %v79
    %117 = vmatprep.subr.mxu0 0.0
    %118 = vmatpush1.msra.mxu0 %v80
    %119 = vmatprep.subr.mxu0 0.0
    %120 = vmatpush1.msra.mxu0 %v81
    %121 = vmatprep.subr.mxu0 0.0
    %122 = vmatpush1.msra.mxu0 0.0
    %123 = vmatprep.subr.mxu0 0.0
    %124 = vmatpush1.msra.mxu0 0.0
    %125 = vmatprep.subr.mxu0 0.0
    %126 = vmatpush1.msra.mxu0 0.0
    %127 = vmatprep.subr.mxu0 0.0
    %128 = vmatpush1.msra.mxu0 0.0
    %129 = vmatprep.subr.mxu0 0.0
    %130 = vmatpush1.msra.mxu0 0.0
    %131 = vmatprep.subr.mxu0 0.0
    %132 = vmatpush1.msra.mxu0 0.0
    %133 = vmatprep.subr.mxu0 0.0
    %134 = vmatpush1.msra.mxu0 0.0
    %135 = vmatprep.subr.mxu0 0.0
    %136 = vmatpush1.msra.mxu0 0.0
    %137 = vmatprep.subr.mxu0 0.0
    %138 = vmatpush1.msra.mxu0 0.0
    %139 = vmatprep.subr.mxu0 0.0
    %140 = vmatpush1.msra.mxu0 0.0
    %141 = vmatprep.subr.mxu0 0.0
    %142 = vmatpush1.msra.mxu0 0.0
    %143 = vmatprep.subr.mxu0 0.0
    %144 = vmatpush1.msra.mxu0 0.0
    %145 = vmatprep.subr.mxu0 0.0
    %146 = vmatpush1.msra.mxu0 0.0
    %147 = vmatprep.subr.mxu0 0.0
    %148 = vmatpush1.msra.mxu0 0.0
    %149 = vmatprep.subr.mxu0 0.0
    %150 = vmatpush1.msra.mxu0 0.0
    %151 = vmatprep.subr.mxu0 0.0
    %152 = vmatpush1.msra.mxu0 0.0
    %153 = vmatprep.mubr.f32.mxu0 0.0
    %154 = vmatmul.mubr.f32.gmra.mrb[0].mxu0 %v65
    %v155 = vpop.f32.mrb[0].mxu0
    %v156 = vadd.f32 %v87, %v155
    %v157 = vpop.f32.mrb[0].mxu0
    %158 = vdwg.mxu0
    %vm159 = vcmask 31744
    %160 = vst.msk [vmem:[%s5] sm:$0xff] %vm159, %v156
    // Predicated region
    $region26: #{tpu_custom_call.1} parent=1 // pred_check
      _
    $region27: #{tpu_custom_call.1} parent=1 // pred_check_branch
      %162 = sbr.rel (0) target = $region29
    $region28: #{tpu_custom_call.1} parent=1 // pred_region
      _
    $region29: #{tpu_custom_call.1} parent=1 // pred_fallthru
      _
    // Predicated region
    $region30: #{tpu_custom_call.1} parent=1 // pred_check
      _
    $region31: #{tpu_custom_call.1} parent=1 // pred_check_branch
      %164 = sbr.rel (0) target = $region33
    $region32: #{tpu_custom_call.1} parent=1 // pred_region
      _
    $region33: #{tpu_custom_call.1} parent=1 // pred_fallthru
      _
    %165 = vsyncpa [#allocation3], 1

</llo_original>
